<compile_context>
chip_gen: v7x
topology: tpu7x:2x2x1
jax: 0.10.0
libtpu: 0.0.40
codegen_flags: <defaults>
</compile_context>

<pallas_src>
import functools

import jax
import jax.numpy as jnp
import numpy as np
from jax.experimental import pallas as pl
from jax.experimental.pallas import tpu as pltpu


def _round_up(x: int, m: int) -> int:
    return ((x + m - 1) // m) * m


def _patch_embed_matmul_kernel(a_ref, b_ref, bias_ref, o_ref):
    # a_ref: (tm, K) flattened patches; b_ref: (K, Np) projection (resident);
    # bias_ref: (1, Np) (resident).  Whole K is contracted in one MXU pass.
    acc = jnp.dot(a_ref[...], b_ref[...], preferred_element_type=jnp.float32)
    acc = acc + bias_ref[...].astype(jnp.float32)   # broadcast over tm rows
    o_ref[...] = acc.astype(o_ref.dtype)


def _choose_tm(mp: int, cap: int, min_blocks: int = 4) -> int:
    """Largest multiple-of-8 divisor of mp that is <= cap, preferring choices
    that leave >= min_blocks grid blocks so v7x's two TensorCores both get work."""
    cap = max(8, min(cap, mp))
    divisors = [d for d in range(8, cap + 1, 8) if mp % d == 0]
    if not divisors:
        return 8
    with_blocks = [d for d in divisors if mp // d >= min_blocks]
    return max(with_blocks) if with_blocks else max(divisors)


def _tiled_matmul_bias(a, b, bias, *, out_dtype,
                       tm_cap=1024, vmem_budget=24 * 1024 * 1024):
    """out = a @ b + bias, tiled over token rows with the weight held resident."""
    M, K = a.shape
    Kb, N = b.shape
    assert K == Kb
    Np = _round_up(N, 128)        # lane-dense output / weight columns
    Mp = _round_up(M, 8)          # sublane alignment for the row axis

    # Optional lane-dense A: pad K up to 128 only when E dominates the traffic.
    Kp = K
    if Np >= 4 * _round_up(K, 128):
        Kp = _round_up(K, 128)
    if Kp != K:
        a = jnp.pad(a, ((0, 0), (0, Kp - K)))
        b = jnp.pad(b, ((0, Kp - K), (0, 0)))

    a_itemsize = jnp.dtype(a.dtype).itemsize
    b_itemsize = jnp.dtype(b.dtype).itemsize
    o_itemsize = jnp.dtype(out_dtype).itemsize

    # VMEM accounting: resident weight + bias (double-buffered by BlockSpec)
    # plus double-buffered A rows and output rows.
    fixed_vmem = 2 * Kp * Np * b_itemsize + 2 * 8 * Np * 4
    per_row = 2 * (Kp * a_itemsize + Np * o_itemsize)
    cap_rows = max(8, (vmem_budget - fixed_vmem) // per_row)
    cap = max(8, min(tm_cap, (cap_rows // 8) * 8))
    tm = _choose_tm(Mp, cap)

    a_p = a if Mp == M else jnp.pad(a, ((0, Mp - M), (0, 0)))
    b_p = b if Np == N else jnp.pad(b, ((0, 0), (0, Np - N)))
    bias_p = bias.reshape(1, N)
    if Np != N:
        bias_p = jnp.pad(bias_p, ((0, 0), (0, Np - N)))

    vmem_limit = int(fixed_vmem + tm * per_row + (2 << 20))

    cost = pl.CostEstimate(
        flops=2 * M * K * N,
        transcendentals=0,
        bytes_accessed=(M * K * a_itemsize + K * N * b_itemsize
                        + M * N * o_itemsize),
    )

    out = pl.pallas_call(
        _patch_embed_matmul_kernel,
        out_shape=jax.ShapeDtypeStruct((Mp, Np), out_dtype),
        grid_spec=pltpu.PrefetchScalarGridSpec(
            num_scalar_prefetch=0,
            grid=(Mp // tm,),                       # 1-D grid over token blocks
            in_specs=[
                pl.BlockSpec((tm, Kp), lambda i: (i, 0)),   # streaming patches
                pl.BlockSpec((Kp, Np), lambda i: (0, 0)),   # resident weight
                pl.BlockSpec((1, Np), lambda i: (0, 0)),    # resident bias
            ],
            out_specs=pl.BlockSpec((tm, Np), lambda i: (i, 0)),
        ),
        compiler_params=pltpu.CompilerParams(
            dimension_semantics=("parallel",),      # megacore can shard the row axis
            vmem_limit_bytes=vmem_limit,
        ),
        cost_estimate=cost,
    )(a_p, b_p, bias_p)

    if Mp != M or Np != N:
        out = out[:M, :N]
    return out


def patch_embed_forward(x, weight, bias, *, patch_size):
    """PatchEmbed.forward: x (B, C, H, W) -> tokens (B, H*(W//P), E)."""
    B, C, H, W = x.shape
    E = weight.shape[0]
    P = patch_size
    assert W % P == 0, "W must be divisible by patch_size"
    Wp = W // P

    # (B, C, H, W) -> (B, H, Wp, C, P) -> (B*H*Wp, C*P); channel-major patch
    # flattening matches Conv2d weight.reshape(E, C*P).
    patches = (
        x.reshape(B, C, H, Wp, P)
        .transpose(0, 2, 3, 1, 4)
        .reshape(B * H * Wp, C * P)
    )
    w_mat = weight.reshape(E, C * P).T  # (C*P, E)

    tokens = _tiled_matmul_bias(patches, w_mat.astype(x.dtype), bias,
                                out_dtype=x.dtype)
    return tokens.reshape(B, H * Wp, E)


def _reference(x, weight, bias, patch_size):
    """Pure-JAX reference via the actual convolution (validates conv-as-GEMM)."""
    y = jax.lax.conv_general_dilated(
        x.astype(jnp.float32),
        weight.astype(jnp.float32),
        window_strides=(1, patch_size),
        padding="VALID",
        dimension_numbers=("NCHW", "OIHW", "NCHW"),
    )
    y = y + bias.astype(jnp.float32).reshape(1, -1, 1, 1)
    B, E, H, Wp = y.shape
    return y.reshape(B, E, H * Wp).transpose(0, 2, 1)


def _run_case(key, B, C, H, W, P, E):
    k1, k2, k3 = jax.random.split(key, 3)
    x = jax.random.normal(k1, (B, C, H, W), dtype=jnp.float32)
    weight = jax.random.normal(k2, (E, C, 1, P), dtype=jnp.float32) * 0.02
    bias = jax.random.normal(k3, (E,), dtype=jnp.float32) * 0.02

    fwd = jax.jit(functools.partial(patch_embed_forward, patch_size=P))
    out = jax.block_until_ready(fwd(x, weight, bias))
    ref = jax.block_until_ready(_reference(x, weight, bias, P))
    assert out.shape == (B, H * (W // P), E), out.shape
    if not np.allclose(np.asarray(out), np.asarray(ref), rtol=1e-2, atol=1e-2):
        raise AssertionError("Pallas PatchEmbed does not match conv reference")


if __name__ == "__main__":
    # Small shapes consistent with the module (patch_size=16, in_chans=3).
    key = jax.random.PRNGKey(0)
    k_a, k_b = jax.random.split(key)
    # Case 1: small E -> K kept at C*P (no lane padding).
    _run_case(k_a, B=2, C=3, H=8, W=32, P=16, E=128)
    # Case 2: larger E -> exercises the lane-dense (K padded to 128) path.
    _run_case(k_b, B=2, C=3, H=8, W=32, P=16, E=512)

    print("KERNEL_OK")
</pallas_src>

<mosaic_0001>
module attributes {stable_mosaic.version = 11 : i64} {
  func.func @_patch_embed_matmul_kernel(%arg0: i32, %arg1: memref<8x48xf32, #tpu.memory_space<vmem>>, %arg2: memref<48x128xf32, #tpu.memory_space<vmem>>, %arg3: memref<1x128xf32, #tpu.memory_space<vmem>>, %arg4: memref<8x128xf32, #tpu.memory_space<vmem>>) attributes {dimension_semantics = [#tpu.dimension_semantics<parallel>], iteration_bounds = array<i64: 4>, scalar_prefetch = 0 : i64, scratch_operands = 0 : i64, tpu.core_type = #tpu.core_type<tc>, window_params = [{transform_indices = @transform_0, window_bounds = array<i64: 8, 48>}, {pipeline_mode = #tpu.pipeline_mode<synchronous>, transform_indices = @transform_1, window_bounds = array<i64: 48, 128>}, {pipeline_mode = #tpu.pipeline_mode<synchronous>, transform_indices = @transform_2, window_bounds = array<i64: 1, 128>}, {transform_indices = @transform_3, window_bounds = array<i64: 8, 128>}]} {
    %c0 = arith.constant 0 : index
    %c0_0 = arith.constant 0 : index
    %0 = vector.load %arg1[%c0, %c0_0] : memref<8x48xf32, #tpu.memory_space<vmem>>, vector<8x48xf32>
    %c0_1 = arith.constant 0 : index
    %c0_2 = arith.constant 0 : index
    %1 = vector.load %arg2[%c0_1, %c0_2] : memref<48x128xf32, #tpu.memory_space<vmem>>, vector<48x128xf32>
    %cst = arith.constant dense<0.000000e+00> : vector<8x128xf32>
    %2 = tpu.matmul %0, %1, %cst {dimension_numbers = #tpu.dot_dimension_numbers<[1], [0], [0], [1], [0, 0, 1, 1], [], []>} : vector<8x48xf32>, vector<48x128xf32>, vector<8x128xf32> -> vector<8x128xf32>
    %c0_3 = arith.constant 0 : index
    %c0_4 = arith.constant 0 : index
    %3 = vector.load %arg3[%c0_3, %c0_4] : memref<1x128xf32, #tpu.memory_space<vmem>>, vector<1x128xf32>
    %4 = vector.broadcast %3 : vector<1x128xf32> to vector<8x128xf32>
    %5 = arith.addf %2, %4 : vector<8x128xf32>
    %c0_5 = arith.constant 0 : index
    %c0_6 = arith.constant 0 : index
    %6 = vector.load %arg4[%c0_5, %c0_6] : memref<8x128xf32, #tpu.memory_space<vmem>>, vector<8x128xf32>
    tpu.vector_store %arg4[%c0_5, %c0_6], %5 {strides = array<i32>} : memref<8x128xf32, #tpu.memory_space<vmem>>, vector<8x128xf32>,
    return
  }
  func.func @transform_0(%arg0: i32) -> (i32, i32) {
    %c0_i32 = arith.constant 0 : i32
    %c0_i32_0 = arith.constant 0 : i32
    return %arg0, %c0_i32 : i32, i32
  }
  func.func @transform_1(%arg0: i32) -> (i32, i32) {
    %c0_i32 = arith.constant 0 : i32
    %c0_i32_0 = arith.constant 0 : i32
    %c0_i32_1 = arith.constant 0 : i32
    return %c0_i32, %c0_i32_0 : i32, i32
  }
  func.func @transform_2(%arg0: i32) -> (i32, i32) {
    %c0_i32 = arith.constant 0 : i32
    %c0_i32_0 = arith.constant 0 : i32
    %c0_i32_1 = arith.constant 0 : i32
    return %c0_i32, %c0_i32_0 : i32, i32
  }
  func.func @transform_3(%arg0: i32) -> (i32, i32) {
    %c0_i32 = arith.constant 0 : i32
    %c0_i32_0 = arith.constant 0 : i32
    return %arg0, %c0_i32 : i32, i32
  }
}

</mosaic_0001>

<llo_original>
// kernel: patch_embed_forward.1
$region0: #{patch_embed_forward.1}
  #allocation0 [shape = 'u32[]', space=smem, size = 0x4, offset = 0x4, fixed_abs, tag = 'smem constant byte address 0x4 - core index']
  #allocation1 [shape = 'u32[144,128]{1,0:T(1,128)}', space=vmem, size = 0x12000, scoped, tag = 'internal scratch']
  %s0 = inlined_call_operand.vmem [shape: f32[32,48], index: 0, kind: input, shape index: {}]
  %s1 = inlined_call_operand.vmem [shape: f32[48,128], index: 1, kind: input, shape index: {}]
  %s2 = inlined_call_operand.vmem [shape: f32[1,128], index: 2, kind: input, shape index: {}]
  %s3 = inlined_call_operand.hbm [shape: f32[32,128], index: 3, kind: output, shape index: {}]
  %s4 = sld [smem:[#allocation0]]
  $region45: #{patch_embed_forward.1} parent=0
    _
  %s6 = ssub.s32 1, %s4
  %s7 = scalar_select 0, %s6, %s4
  $region1: #{patch_embed_forward.1} parent=0
    #allocation2 [shape = 'u8[8192]{0}', space=vmem, size = 0x2000, scoped, tag = 'output window, operand 0']
    #allocation3 [shape = 's32[2]{0}', space=sflag, size = 0x8, scoped, tag = 'scoped memory for patch_embed_forward.1']
    %8 = vsyncpa [#allocation3], 0
    %s9 = scalar_lea.sflag [#allocation3], 1
    %10 = vsyncpa %s9, 0
    loop: start=0, step=1, limit=6
    $region2: #{patch_embed_forward.1} parent=1 // loop_pre_header
      _
    $region3: #{patch_embed_forward.1} parent=1 // loop_header
      %s12 = sphi 0, %s16
      %p13 = scmp.ge.s32.totalorder %s12, 6
      %s22 = sphi 0, %s24
      %s25 = sphi 0, %s22
      %s26 = sphi 0, %s25
      %s42 = sphi 0, %s26
      %s46 = sphi 0, %s46
      %s48 = sphi 0, %s46
      %s49 = sphi 0, %s48
      %s63 = sphi 0, %s49
      %s67 = sphi 0, %s67
      %s69 = sphi 0, %s67
      %s70 = sphi 0, %s69
      %s84 = sphi 0, %s70
      %s90 = sphi 0, %s92
      %s93 = sphi 0, %s90
      %s94 = sphi 0, %s93
      %s110 = sphi 0, %s94
    $region4: #{patch_embed_forward.1} parent=1 // loop_header_branch
      %15 = sbr.rel (%p13) target = $region8
    $region5: #{patch_embed_forward.1} parent=1 // loop_body
      %s17 = ssub.s32 %s12, 1
      %s18 = ssub.s32 %s12, 2
      %s19 = sadd.s32 %s12, 1
      %s20 = ssub.s32 %s12, %s19
      %p21 = scmp.eq.s32.totalorder %s20, 0
      %s23 = sadd.s32 %s22, 1
      %s24 = scalar_select %p21, %s22, %s23
      %p27 = pneg %p21
      %p28 = scmp.eq.s32.totalorder %s12, 3
      %p29 = por %p27, %p28
      %p30 = scmp.ne.s32.totalorder %s22, %s25
      %p31 = scmp.eq.s32.totalorder %s12, 0
      %p32 = por %p30, %p31
      %p33 = scmp.ne.s32.totalorder %s22, %s25
      %p34 = scmp.eq.s32.totalorder %s17, 3
      %p35 = por %p33, %p34
      %p36 = scmp.ne.s32.totalorder %s25, %s26
      %p37 = scmp.eq.s32.totalorder %s17, 0
      %p38 = por %p36, %p37
      %p39 = scmp.ne.s32.totalorder %s25, %s26
      %p40 = scmp.eq.s32.totalorder %s18, 3
      %p41 = por %p39, %p40
      %p43 = scmp.ne.s32.totalorder %s26, %s42
      %p44 = scmp.eq.s32.totalorder %s18, 0
      %p45 = por %p43, %p44
      %s47 = sadd.s32 %s46, 1
      %p50 = scmp.eq.s32.totalorder %s12, 3
      %p51 = scmp.ne.s32.totalorder %s46, %s48
      %p52 = scmp.eq.s32.totalorder %s12, 0
      %p53 = por %p51, %p52
      %p54 = scmp.ne.s32.totalorder %s46, %s48
      %p55 = scmp.eq.s32.totalorder %s17, 3
      %p56 = por %p54, %p55
      %p57 = scmp.ne.s32.totalorder %s48, %s49
      %p58 = scmp.eq.s32.totalorder %s17, 0
      %p59 = por %p57, %p58
      %p60 = scmp.ne.s32.totalorder %s48, %s49
      %p61 = scmp.eq.s32.totalorder %s18, 3
      %p62 = por %p60, %p61
      %p64 = scmp.ne.s32.totalorder %s49, %s63
      %p65 = scmp.eq.s32.totalorder %s18, 0
      %p66 = por %p64, %p65
      %s68 = sadd.s32 %s67, 1
      %p71 = scmp.eq.s32.totalorder %s12, 3
      %p72 = scmp.ne.s32.totalorder %s67, %s69
      %p73 = scmp.eq.s32.totalorder %s12, 0
      %p74 = por %p72, %p73
      %p75 = scmp.ne.s32.totalorder %s67, %s69
      %p76 = scmp.eq.s32.totalorder %s17, 3
      %p77 = por %p75, %p76
      %p78 = scmp.ne.s32.totalorder %s69, %s70
      %p79 = scmp.eq.s32.totalorder %s17, 0
      %p80 = por %p78, %p79
      %p81 = scmp.ne.s32.totalorder %s69, %s70
      %p82 = scmp.eq.s32.totalorder %s18, 3
      %p83 = por %p81, %p82
      %p85 = scmp.ne.s32.totalorder %s70, %s84
      %p86 = scmp.eq.s32.totalorder %s18, 0
      %p87 = por %p85, %p86
      %s88 = ssub.s32 %s12, %s19
      %p89 = scmp.eq.s32.totalorder %s88, 0
      %s91 = sadd.s32 %s90, 1
      %s92 = scalar_select %p89, %s90, %s91
      %p95 = pneg %p89
      %p96 = scmp.eq.s32.totalorder %s12, 3
      %p97 = por %p95, %p96
      %p98 = scmp.ne.s32.totalorder %s90, %s93
      %p99 = scmp.eq.s32.totalorder %s12, 0
      %p100 = por %p98, %p99
      %p101 = scmp.ne.s32.totalorder %s90, %s93
      %p102 = scmp.eq.s32.totalorder %s17, 3
      %p103 = por %p101, %p102
      %p104 = scmp.ne.s32.totalorder %s93, %s94
      %p105 = scmp.eq.s32.totalorder %s17, 0
      %p106 = por %p104, %p105
      %p107 = scmp.ne.s32.totalorder %s93, %s94
      %p108 = scmp.eq.s32.totalorder %s18, 3
      %p109 = por %p107, %p108
      %p111 = scmp.ne.s32.totalorder %s94, %s110
      %p112 = scmp.eq.s32.totalorder %s18, 0
      %p113 = por %p111, %p112
      %p114 = scmp.le.s32.totalorder 1, %s12
      %p115 = scmp.lt.s32.totalorder %s12, 5
      %p116 = pnand %p114, %p115
      %p117 = pneg %p116
      // Predicated region
      $region9: #{patch_embed_forward.1} parent=5 // pred_check
        _
      $region10: #{patch_embed_forward.1} parent=5 // pred_check_branch
        %119 = sbr.rel (%p116) target = $region12
      $region11: #{patch_embed_forward.1} parent=5 // pred_region
        %s120 = ssub.s32 %s12, 1
        // Predicated region
        $region13: #{patch_embed_forward.1} parent=11 // pred_check
          %p121 = pneg %p59
        $region14: #{patch_embed_forward.1} parent=11 // pred_check_branch
          %123 = sbr.rel (%p121) target = $region16
        $region15: #{patch_embed_forward.1} parent=11 // pred_region
          _
        $region16: #{patch_embed_forward.1} parent=11 // pred_fallthru
          _
        // Predicated region
        $region17: #{patch_embed_forward.1} parent=11 // pred_check
          %p124 = pneg %p80
        $region18: #{patch_embed_forward.1} parent=11 // pred_check_branch
          %126 = sbr.rel (%p124) target = $region20
        $region19: #{patch_embed_forward.1} parent=11 // pred_region
          _
        $region20: #{patch_embed_forward.1} parent=11 // pred_fallthru
          _
      $region12: #{patch_embed_forward.1} parent=5 // pred_fallthru
        _
      %p127 = scmp.lt.s32.totalorder %s12, 4
      // Predicated region
      $region21: #{patch_embed_forward.1} parent=5 // pred_check
        %p128 = pneg %p127
      $region22: #{patch_embed_forward.1} parent=5 // pred_check_branch
        %130 = sbr.rel (%p128) target = $region24
      $region23: #{patch_embed_forward.1} parent=5 // pred_region
        // Predicated region
        $region25: #{patch_embed_forward.1} parent=23 // pred_check
          %p131 = pneg %p32
        $region26: #{patch_embed_forward.1} parent=23 // pred_check_branch
          %133 = sbr.rel (%p131) target = $region28
        $region27: #{patch_embed_forward.1} parent=23 // pred_region
          %p134 = scmp.lt.s32.totalorder %s12, 3
          %s135 = scalar_select %p134, %s12, 3
          %s136 = smul.addr %s135, 8
          %s137 = scalar_lea.vmem %s0, %s136
        $region28: #{patch_embed_forward.1} parent=23 // pred_fallthru
          _
      $region24: #{patch_embed_forward.1} parent=5 // pred_fallthru
        _
      %p138 = scmp.le.s32.totalorder 1, %s12
      %p139 = scmp.lt.s32.totalorder %s12, 5
      %p140 = pnand %p138, %p139
      %p141 = pneg %p140
      // Predicated region
      $region29: #{patch_embed_forward.1} parent=5 // pred_check
        _
      $region30: #{patch_embed_forward.1} parent=5 // pred_check_branch
        %143 = sbr.rel (%p140) target = $region32
      $region31: #{patch_embed_forward.1} parent=5 // pred_region
        %s144 = ssub.s32 %s12, 1
        %p145 = scmp.lt.s32.totalorder %s17, 3
        %s146 = scalar_select %p145, %s17, 3
        %s147 = smul.addr %s146, 8
        %s148 = scalar_lea.vmem %s0, %s147
        %p149 = pneg %p38
        %p150 = pneg %p35
        %p151 = pneg %p59
        %p152 = pneg %p56
        %p153 = pneg %p80
        %p154 = pneg %p77
        %p155 = pneg %p106
        %p156 = pneg %p103
        %s157 = sand.u32 %s93, 1
        %s158 = scalar_lea.sflag [#allocation3], %s157
        %s159 = sand.u32 %s93, 1
        %s160 = smul.addr %s159, 8
        %s161 = scalar_lea.vmem [#allocation2], %s160
        %p162 = scmp.lt.s32.totalorder %s17, 3
        %s163 = scalar_select %p162, %s17, 3
        %s164 = smul.addr %s163, 8
        %s165 = scalar_lea.vmem %s0, %s164
        %v166 = vld [vmem:[%s165] sm:$0xff]
        %v167 = vld [vmem:[%s1] sm:$0xff]
        %v168 = vld [vmem:[%s1 + $0x8] sm:$0xff]
        %v169 = vld [vmem:[%s1 + $0x10] sm:$0xff]
        %v170 = vld [vmem:[%s1 + $0x18] sm:$0xff]
        %v171 = vld [vmem:[%s1 + $0x20] sm:$0xff]
        %v172 = vld [vmem:[%s1 + $0x28] sm:$0xff]
        %v173 = vld [vmem:[%s2] sm:$0x1]
        %v175 = vlaneseq
        %v176 = vshrl.u32 %v175, 7
        %v177 = vsub.s32 0, %v176
        %v178 = vrot.slane %v173, %v177
        %vm180 = vcmask 392192
        %v182 = vsel %vm180, %v166, 0
        %184 = vmatprep.subr.mxu0 0.0
        %185 = vmatpush1.msra.mxu0 %v167
        %186 = vmatprep.subr.mxu0 0.0
        %187 = vmatpush1.msra.mxu0 %v168
        %188 = vmatprep.subr.mxu0 0.0
        %189 = vmatpush1.msra.mxu0 %v169
        %190 = vmatprep.subr.mxu0 0.0
        %191 = vmatpush1.msra.mxu0 %v170
        %192 = vmatprep.subr.mxu0 0.0
        %193 = vmatpush1.msra.mxu0 %v171
        %194 = vmatprep.subr.mxu0 0.0
        %195 = vmatpush1.msra.mxu0 %v172
        %196 = vmatprep.subr.mxu0 0.0
        %197 = vmatpush1.msra.mxu0 0.0
        %198 = vmatprep.subr.mxu0 0.0
        %199 = vmatpush1.msra.mxu0 0.0
        %200 = vmatprep.subr.mxu0 0.0
        %201 = vmatpush1.msra.mxu0 0.0
        %202 = vmatprep.subr.mxu0 0.0
        %203 = vmatpush1.msra.mxu0 0.0
        %204 = vmatprep.subr.mxu0 0.0
        %205 = vmatpush1.msra.mxu0 0.0
        %206 = vmatprep.subr.mxu0 0.0
        %207 = vmatpush1.msra.mxu0 0.0
        %208 = vmatprep.subr.mxu0 0.0
        %209 = vmatpush1.msra.mxu0 0.0
        %210 = vmatprep.subr.mxu0 0.0
        %211 = vmatpush1.msra.mxu0 0.0
        %212 = vmatprep.subr.mxu0 0.0
        %213 = vmatpush1.msra.mxu0 0.0
        %214 = vmatprep.subr.mxu0 0.0
        %215 = vmatpush1.msra.mxu0 0.0
        %216 = vmatprep.subr.mxu0 0.0
        %217 = vmatpush1.msra.mxu0 0.0
        %218 = vmatprep.subr.mxu0 0.0
        %219 = vmatpush1.msra.mxu0 0.0
        %220 = vmatprep.subr.mxu0 0.0
        %221 = vmatpush1.msra.mxu0 0.0
        %222 = vmatprep.subr.mxu0 0.0
        %223 = vmatpush1.msra.mxu0 0.0
        %224 = vmatprep.subr.mxu0 0.0
        %225 = vmatpush1.msra.mxu0 0.0
        %226 = vmatprep.subr.mxu0 0.0
        %227 = vmatpush1.msra.mxu0 0.0
        %228 = vmatprep.subr.mxu0 0.0
        %229 = vmatpush1.msra.mxu0 0.0
        %230 = vmatprep.subr.mxu0 0.0
        %231 = vmatpush1.msra.mxu0 0.0
        %232 = vmatprep.subr.mxu0 0.0
        %233 = vmatpush1.msra.mxu0 0.0
        %234 = vmatprep.subr.mxu0 0.0
        %235 = vmatpush1.msra.mxu0 0.0
        %236 = vmatprep.subr.mxu0 0.0
        %237 = vmatpush1.msra.mxu0 0.0
        %238 = vmatprep.subr.mxu0 0.0
        %239 = vmatpush1.msra.mxu0 0.0
        %240 = vmatprep.subr.mxu0 0.0
        %241 = vmatpush1.msra.mxu0 0.0
        %242 = vmatprep.subr.mxu0 0.0
        %243 = vmatpush1.msra.mxu0 0.0
        %244 = vmatprep.subr.mxu0 0.0
        %245 = vmatpush1.msra.mxu0 0.0
        %246 = vmatprep.subr.mxu0 0.0
        %247 = vmatpush1.msra.mxu0 0.0
        %248 = vmatprep.mubr.f32.mxu0 0.0
        %249 = vmatmul.mubr.f32.gmra.mrb[0].mxu0 %v182
        %v250 = vpop.f32.mrb[0].mxu0
        %v251 = vadd.f32 %v178, %v250
        %v252 = vpop.f32.mrb[0].mxu0
        %253 = vdwg.mxu0
        %254 = vst [vmem:[%s161] sm:$0xff] %v251
        %s255 = sand.u32 %s93, 1
        %s256 = scalar_lea.sflag [#allocation3], %s255
        %s257 = sand.u32 %s93, 1
        %s258 = smul.addr %s257, 8
        %s259 = scalar_lea.vmem [#allocation2], %s258
        // Predicated region
        $region33: #{patch_embed_forward.1} parent=31 // pred_check
          %p260 = pneg %p103
        $region34: #{patch_embed_forward.1} parent=31 // pred_check_branch
          %262 = sbr.rel (%p260) target = $region36
        $region35: #{patch_embed_forward.1} parent=31 // pred_region
          %s264 = ssub.s32 128, 128
          %265 = vsyncadd %s256, %s264
          %s266 = smul.addr %s17, 128
          %s267 = scalar_lea.hbm %s3, %s266
          %s269 = sshll.u32 %s259, 4
          %s270 = int_to_ptr.vmem [resolvable:$true] %s269
          %272 = dma.vmem_to_hbm [thread:$0]  %s270, 128, %s267, %s256
        $region36: #{patch_embed_forward.1} parent=31 // pred_fallthru
          _
      $region32: #{patch_embed_forward.1} parent=5 // pred_fallthru
        _
      %p273 = scmp.le.s32.totalorder 2, %s12
      // Predicated region
      $region37: #{patch_embed_forward.1} parent=5 // pred_check
        %p274 = pneg %p273
      $region38: #{patch_embed_forward.1} parent=5 // pred_check_branch
        %276 = sbr.rel (%p274) target = $region40
      $region39: #{patch_embed_forward.1} parent=5 // pred_region
        %s277 = ssub.s32 %s12, 2
        // Predicated region
        $region41: #{patch_embed_forward.1} parent=39 // pred_check
          %p278 = pneg %p109
        $region42: #{patch_embed_forward.1} parent=39 // pred_check_branch
          %280 = sbr.rel (%p278) target = $region44
        $region43: #{patch_embed_forward.1} parent=39 // pred_region
          %s281 = sand.u32 %s94, 1
          %s282 = scalar_lea.sflag [#allocation3], %s281
          %s283 = sand.u32 %s94, 1
          %s284 = smul.addr %s283, 8
          %s285 = scalar_lea.vmem [#allocation2], %s284
          %286 = dma.done %s282, 128
        $region44: #{patch_embed_forward.1} parent=39 // pred_fallthru
          _
      $region40: #{patch_embed_forward.1} parent=5 // pred_fallthru
        _
    $region6: #{patch_embed_forward.1} parent=1 // loop_footer
      %s16 = sadd.s32 1, %s12
    $region7: #{patch_embed_forward.1} parent=1 // loop_footer_branch
      %11 = sbr.rel target = $region3
    $region8: #{patch_embed_forward.1} parent=1 // loop_exit
      _
    %287 = vsyncpa [#allocation3], 1
    %s288 = scalar_lea.sflag [#allocation3], 1
    %289 = vsyncpa %s288, 1

</llo_original>
